<compile_context>
chip_gen: v5e
topology: v5e:2x2
jax: 0.10.0
libtpu: 0.0.40
codegen_flags: <defaults>
</compile_context>

<pallas_src>
import jax
import jax.numpy as jnp
from jax.experimental import pallas as pl
from jax.experimental.pallas import tpu as pltpu

LEAKY_SLOPE = 0.01  # nn.LeakyReLU default negative_slope


def _round_up(x, m):
    return (x + m - 1) // m * m


def _make_fused_mlp_kernel(n_layers):
    """Kernel: x_ref, (w0, b0, w1, b1, ...), o_ref — all layers fused."""

    def kernel(*refs):
        x_ref = refs[0]
        o_ref = refs[1 + 2 * n_layers]
        h = x_ref[...]  # [TM, K0] in compute dtype, stays in vregs/VMEM
        for layer in range(n_layers):
            w_ref = refs[1 + 2 * layer]   # [cin, cout], compute dtype
            b_ref = refs[2 + 2 * layer]   # [1, cout], f32
            # MXU matmul with f32 accumulation.
            y = jnp.dot(h, w_ref[...], preferred_element_type=jnp.float32)
            y = y + b_ref[...]                       # f32 bias add (v5e-safe)
            y = jnp.maximum(y, LEAKY_SLOPE * y)      # LeakyReLU: mul + max only
            # Cast back to the matmul dtype only when feeding the next MXU op.
            h = y.astype(w_ref.dtype) if layer + 1 < n_layers else y
        o_ref[...] = h.astype(o_ref.dtype)

    return kernel


def class_box_backbone_forward(x, params, *, tm=1024, compute_dtype=None,
                               min_parallel_tiles=2):
    """Fused forward pass of the whole MLP in one pallas_call.

    x:      [M, K0]
    params: list of (w, b) with w: [cin, cout] (PyTorch weight.T), b: [cout]
    compute_dtype: optional matmul/IO dtype (e.g. jnp.bfloat16) — accumulation,
                   bias-add and LeakyReLU remain f32.
    """
    M, K0 = x.shape
    n_layers = len(params)
    dims = [K0] + [w.shape[1] for (w, _) in params]
    out_dim = dims[-1]
    cdt = jnp.dtype(compute_dtype) if compute_dtype is not None else x.dtype

    # Sublane alignment: 8 for 4-byte dtypes, 16 for packed bf16.
    align = 16 if cdt.itemsize < 4 else 8

    # Balanced batch tiling: minimize ragged-tile waste; keep >= 2 tiles when the
    # batch is large so the "parallel" axis can shard across v7x's dual TCs.
    n_tiles = pl.cdiv(M, tm)
    if M >= 128:
        n_tiles = max(n_tiles, min_parallel_tiles)
    TM = _round_up(pl.cdiv(M, n_tiles), align)
    grid_m = pl.cdiv(M, TM)

    # Boundary cast only (no HBM padding copies). Rows past M in the last tile
    # are read as unspecified data but there is no cross-row mixing and their
    # output rows are masked off by Pallas on writeback.
    args = [x.astype(cdt)]
    in_specs = [pl.BlockSpec((TM, K0), lambda i: (i, 0))]
    for (w, b) in params:
        cin, cout = w.shape
        args.append(w.astype(cdt))                          # [cin, cout]
        args.append(b.reshape(1, cout).astype(jnp.float32))  # f32 bias: tiny, exact
        in_specs.append(pl.BlockSpec((cin, cout), lambda i: (0, 0)))  # replicated
        in_specs.append(pl.BlockSpec((1, cout), lambda i: (0, 0)))    # replicated

    out = pl.pallas_call(
        _make_fused_mlp_kernel(n_layers),
        out_shape=jax.ShapeDtypeStruct((M, out_dim), cdt),
        grid=(grid_m,),
        in_specs=in_specs,
        out_specs=pl.BlockSpec((TM, out_dim), lambda i: (i, 0)),
        compiler_params=pltpu.CompilerParams(
            dimension_semantics=("parallel",),  # batch tiles independent -> megacore
        ),
    )(*args)
    return out


def init_class_box_backbone_params(key, in_features, filters):
    """Deterministic synthetic parameters matching the module's layer shapes.

    Layer 0: LazyLinear(in_features -> filters[0]); layer i: Linear(filters[i-1]
    -> filters[i]). Weights stored as [in, out] (= PyTorch weight.T).
    """
    dims = [in_features] + list(filters)
    params = []
    for cin, cout in zip(dims[:-1], dims[1:]):
        kw, kb, key = jax.random.split(key, 3)
        bound = 1.0 / jnp.sqrt(jnp.float32(cin))
        w = jax.random.uniform(kw, (cin, cout), jnp.float32, -bound, bound)
        b = jax.random.uniform(kb, (cout,), jnp.float32, -bound, bound)
        params.append((w, b))
    return params


def _reference_forward(x, params, compute_dtype=None):
    cdt = jnp.dtype(compute_dtype) if compute_dtype is not None else x.dtype
    h = x.astype(cdt)
    n = len(params)
    for i, (w, b) in enumerate(params):
        y = jnp.dot(h, w.astype(cdt), preferred_element_type=jnp.float32)
        y = y + b.astype(jnp.float32)
        y = jnp.maximum(y, LEAKY_SLOPE * y)
        h = y.astype(cdt) if i + 1 < n else y
    return h.astype(cdt)


if __name__ == "__main__":
    key = jax.random.PRNGKey(0)
    kx, kx2, kx3, kp = jax.random.split(key, 4)

    in_features = 32          # LazyLinear infers this from the input
    filters = [64, 128, 64]   # module config
    params = init_class_box_backbone_params(kp, in_features, filters)

    # Small-batch f32 case (matches the module's typical head usage).
    batch = 8
    x = jax.random.normal(kx, (batch, in_features), jnp.float32)
    out = jax.block_until_ready(class_box_backbone_forward(x, params))
    ref = _reference_forward(x, params)
    assert out.shape == (batch, filters[-1])
    assert jnp.allclose(out, ref, atol=1e-5, rtol=1e-5)

    # Ragged batch: exercises balanced TM (2 tiles) + masked last tile, f32.
    batch2 = 300
    x2 = jax.random.normal(kx2, (batch2, in_features), jnp.float32)
    out2 = jax.block_until_ready(class_box_backbone_forward(x2, params))
    ref2 = _reference_forward(x2, params)
    assert out2.shape == (batch2, filters[-1])
    assert jnp.allclose(out2, ref2, atol=1e-5, rtol=1e-5)

    # Large batch with bf16 boundary cast (halved HBM traffic, bf16 MXU path).
    batch3 = 1024
    x3 = jax.random.normal(kx3, (batch3, in_features), jnp.float32)
    out3 = jax.block_until_ready(
        class_box_backbone_forward(x3, params, compute_dtype=jnp.bfloat16))
    ref3 = _reference_forward(x3, params, compute_dtype=jnp.bfloat16)
    assert out3.shape == (batch3, filters[-1])
    assert out3.dtype == jnp.bfloat16
    assert jnp.allclose(out3.astype(jnp.float32), ref3.astype(jnp.float32),
                        atol=2e-2, rtol=2e-2)

    print("KERNEL_OK")
</pallas_src>

<mosaic_0001>
module attributes {stable_mosaic.version = 11 : i64} {
  func.func @kernel(%arg0: i32, %arg1: memref<8x32xf32, #tpu.memory_space<vmem>>, %arg2: memref<32x64xf32, #tpu.memory_space<vmem>>, %arg3: memref<1x64xf32, #tpu.memory_space<vmem>>, %arg4: memref<64x128xf32, #tpu.memory_space<vmem>>, %arg5: memref<1x128xf32, #tpu.memory_space<vmem>>, %arg6: memref<128x64xf32, #tpu.memory_space<vmem>>, %arg7: memref<1x64xf32, #tpu.memory_space<vmem>>, %arg8: memref<8x64xf32, #tpu.memory_space<vmem>>) attributes {dimension_semantics = [#tpu.dimension_semantics<parallel>], iteration_bounds = array<i64: 1>, scalar_prefetch = 0 : i64, scratch_operands = 0 : i64, tpu.core_type = #tpu.core_type<tc>, window_params = [{transform_indices = @transform_0, window_bounds = array<i64: 8, 32>}, {pipeline_mode = #tpu.pipeline_mode<synchronous>, transform_indices = @transform_1, window_bounds = array<i64: 32, 64>}, {pipeline_mode = #tpu.pipeline_mode<synchronous>, transform_indices = @transform_2, window_bounds = array<i64: 1, 64>}, {pipeline_mode = #tpu.pipeline_mode<synchronous>, transform_indices = @transform_3, window_bounds = array<i64: 64, 128>}, {pipeline_mode = #tpu.pipeline_mode<synchronous>, transform_indices = @transform_4, window_bounds = array<i64: 1, 128>}, {pipeline_mode = #tpu.pipeline_mode<synchronous>, transform_indices = @transform_5, window_bounds = array<i64: 128, 64>}, {pipeline_mode = #tpu.pipeline_mode<synchronous>, transform_indices = @transform_6, window_bounds = array<i64: 1, 64>}, {transform_indices = @transform_7, window_bounds = array<i64: 8, 64>}]} {
    %c0 = arith.constant 0 : index
    %c0_0 = arith.constant 0 : index
    %0 = vector.load %arg1[%c0, %c0_0] : memref<8x32xf32, #tpu.memory_space<vmem>>, vector<8x32xf32>
    %c0_1 = arith.constant 0 : index
    %c0_2 = arith.constant 0 : index
    %1 = vector.load %arg2[%c0_1, %c0_2] : memref<32x64xf32, #tpu.memory_space<vmem>>, vector<32x64xf32>
    %cst = arith.constant dense<0.000000e+00> : vector<8x64xf32>
    %2 = tpu.matmul %0, %1, %cst {dimension_numbers = #tpu.dot_dimension_numbers<[1], [0], [0], [1], [0, 0, 1, 1], [], []>} : vector<8x32xf32>, vector<32x64xf32>, vector<8x64xf32> -> vector<8x64xf32>
    %c0_3 = arith.constant 0 : index
    %c0_4 = arith.constant 0 : index
    %3 = vector.load %arg3[%c0_3, %c0_4] : memref<1x64xf32, #tpu.memory_space<vmem>>, vector<1x64xf32>
    %4 = vector.broadcast %3 : vector<1x64xf32> to vector<8x64xf32>
    %5 = arith.addf %2, %4 : vector<8x64xf32>
    %cst_5 = arith.constant 0.00999999977 : f32
    %6 = vector.broadcast %cst_5 : f32 to vector<8x64xf32>
    %7 = arith.mulf %6, %5 : vector<8x64xf32>
    %8 = arith.maximumf %5, %7 : vector<8x64xf32>
    %c0_6 = arith.constant 0 : index
    %c0_7 = arith.constant 0 : index
    %9 = vector.load %arg4[%c0_6, %c0_7] : memref<64x128xf32, #tpu.memory_space<vmem>>, vector<64x128xf32>
    %cst_8 = arith.constant dense<0.000000e+00> : vector<8x128xf32>
    %10 = tpu.matmul %8, %9, %cst_8 {dimension_numbers = #tpu.dot_dimension_numbers<[1], [0], [0], [1], [0, 0, 1, 1], [], []>} : vector<8x64xf32>, vector<64x128xf32>, vector<8x128xf32> -> vector<8x128xf32>
    %c0_9 = arith.constant 0 : index
    %c0_10 = arith.constant 0 : index
    %11 = vector.load %arg5[%c0_9, %c0_10] : memref<1x128xf32, #tpu.memory_space<vmem>>, vector<1x128xf32>
    %12 = vector.broadcast %11 : vector<1x128xf32> to vector<8x128xf32>
    %13 = arith.addf %10, %12 : vector<8x128xf32>
    %cst_11 = arith.constant 0.00999999977 : f32
    %14 = vector.broadcast %cst_11 : f32 to vector<8x128xf32>
    %15 = arith.mulf %14, %13 : vector<8x128xf32>
    %16 = arith.maximumf %13, %15 : vector<8x128xf32>
    %c0_12 = arith.constant 0 : index
    %c0_13 = arith.constant 0 : index
    %17 = vector.load %arg6[%c0_12, %c0_13] : memref<128x64xf32, #tpu.memory_space<vmem>>, vector<128x64xf32>
    %cst_14 = arith.constant dense<0.000000e+00> : vector<8x64xf32>
    %18 = tpu.matmul %16, %17, %cst_14 {dimension_numbers = #tpu.dot_dimension_numbers<[1], [0], [0], [1], [0, 0, 1, 1], [], []>} : vector<8x128xf32>, vector<128x64xf32>, vector<8x64xf32> -> vector<8x64xf32>
    %c0_15 = arith.constant 0 : index
    %c0_16 = arith.constant 0 : index
    %19 = vector.load %arg7[%c0_15, %c0_16] : memref<1x64xf32, #tpu.memory_space<vmem>>, vector<1x64xf32>
    %20 = vector.broadcast %19 : vector<1x64xf32> to vector<8x64xf32>
    %21 = arith.addf %18, %20 : vector<8x64xf32>
    %cst_17 = arith.constant 0.00999999977 : f32
    %22 = vector.broadcast %cst_17 : f32 to vector<8x64xf32>
    %23 = arith.mulf %22, %21 : vector<8x64xf32>
    %24 = arith.maximumf %21, %23 : vector<8x64xf32>
    %c0_18 = arith.constant 0 : index
    %c0_19 = arith.constant 0 : index
    %25 = vector.load %arg8[%c0_18, %c0_19] : memref<8x64xf32, #tpu.memory_space<vmem>>, vector<8x64xf32>
    tpu.vector_store %arg8[%c0_18, %c0_19], %24 {strides = array<i32>} : memref<8x64xf32, #tpu.memory_space<vmem>>, vector<8x64xf32>,
    return
  }
  func.func @transform_0(%arg0: i32) -> (i32, i32) {
    %c0_i32 = arith.constant 0 : i32
    %c0_i32_0 = arith.constant 0 : i32
    return %arg0, %c0_i32 : i32, i32
  }
  func.func @transform_1(%arg0: i32) -> (i32, i32) {
    %c0_i32 = arith.constant 0 : i32
    %c0_i32_0 = arith.constant 0 : i32
    %c0_i32_1 = arith.constant 0 : i32
    return %c0_i32, %c0_i32_0 : i32, i32
  }
  func.func @transform_2(%arg0: i32) -> (i32, i32) {
    %c0_i32 = arith.constant 0 : i32
    %c0_i32_0 = arith.constant 0 : i32
    %c0_i32_1 = arith.constant 0 : i32
    return %c0_i32, %c0_i32_0 : i32, i32
  }
  func.func @transform_3(%arg0: i32) -> (i32, i32) {
    %c0_i32 = arith.constant 0 : i32
    %c0_i32_0 = arith.constant 0 : i32
    %c0_i32_1 = arith.constant 0 : i32
    return %c0_i32, %c0_i32_0 : i32, i32
  }
  func.func @transform_4(%arg0: i32) -> (i32, i32) {
    %c0_i32 = arith.constant 0 : i32
    %c0_i32_0 = arith.constant 0 : i32
    %c0_i32_1 = arith.constant 0 : i32
    return %c0_i32, %c0_i32_0 : i32, i32
  }
  func.func @transform_5(%arg0: i32) -> (i32, i32) {
    %c0_i32 = arith.constant 0 : i32
    %c0_i32_0 = arith.constant 0 : i32
    %c0_i32_1 = arith.constant 0 : i32
    return %c0_i32, %c0_i32_0 : i32, i32
  }
  func.func @transform_6(%arg0: i32) -> (i32, i32) {
    %c0_i32 = arith.constant 0 : i32
    %c0_i32_0 = arith.constant 0 : i32
    %c0_i32_1 = arith.constant 0 : i32
    return %c0_i32, %c0_i32_0 : i32, i32
  }
  func.func @transform_7(%arg0: i32) -> (i32, i32) {
    %c0_i32 = arith.constant 0 : i32
    %c0_i32_0 = arith.constant 0 : i32
    return %arg0, %c0_i32 : i32, i32
  }
}

</mosaic_0001>

<llo_original>
// kernel: tpu_custom_call.1
$region0: #{tpu_custom_call.1}
  #allocation0 [shape = 'u32[]', space=smem, size = 0x4, offset = 0x4, fixed_abs, tag = 'smem constant byte address 0x4 - core index']
  #allocation1 [shape = 'u32[72,128]{1,0:T(1,128)}', space=vmem, size = 0x9000, scoped, tag = 'internal scratch']
  %s0 = inlined_call_operand.vmem [shape: f32[8,32], index: 0, kind: input, shape index: {}]
  %s1 = inlined_call_operand.vmem [shape: f32[32,64], index: 1, kind: input, shape index: {}]
  %s2 = inlined_call_operand.vmem [shape: f32[1,64], index: 2, kind: input, shape index: {}]
  %s3 = inlined_call_operand.vmem [shape: f32[64,128], index: 3, kind: input, shape index: {}]
  %s4 = inlined_call_operand.vmem [shape: f32[1,128], index: 4, kind: input, shape index: {}]
  %s5 = inlined_call_operand.vmem [shape: f32[128,64], index: 5, kind: input, shape index: {}]
  %s6 = inlined_call_operand.vmem [shape: f32[1,64], index: 6, kind: input, shape index: {}]
  %s7 = inlined_call_operand.hbm [shape: f32[8,64], index: 7, kind: output, shape index: {}]
  %s8 = sld [smem:[#allocation0]]
  $region38: #{tpu_custom_call.1} parent=0
    _
  %s10 = ssub.s32 1, %s8
  %s11 = scalar_select 0, %s10, %s8
  $region1: #{tpu_custom_call.1} parent=0
    #allocation2 [shape = 'u8[4096]{0}', space=vmem, size = 0x1000, scoped, tag = 'output window, operand 0, single buffered']
    #allocation3 [shape = 's32[1]{0}', space=sflag, size = 0x4, scoped, tag = 'scoped memory for tpu_custom_call.1']
    %12 = vsyncpa [#allocation3], 0
    // Predicated region
    $region2: #{tpu_custom_call.1} parent=1 // pred_check
      _
    $region3: #{tpu_custom_call.1} parent=1 // pred_check_branch
      %14 = sbr.rel (0) target = $region5
    $region4: #{tpu_custom_call.1} parent=1 // pred_region
      _
    $region5: #{tpu_custom_call.1} parent=1 // pred_fallthru
      _
    // Predicated region
    $region6: #{tpu_custom_call.1} parent=1 // pred_check
      _
    $region7: #{tpu_custom_call.1} parent=1 // pred_check_branch
      %16 = sbr.rel (0) target = $region9
    $region8: #{tpu_custom_call.1} parent=1 // pred_region
      _
    $region9: #{tpu_custom_call.1} parent=1 // pred_fallthru
      _
    // Predicated region
    $region10: #{tpu_custom_call.1} parent=1 // pred_check
      _
    $region11: #{tpu_custom_call.1} parent=1 // pred_check_branch
      %18 = sbr.rel (0) target = $region13
    $region12: #{tpu_custom_call.1} parent=1 // pred_region
      _
    $region13: #{tpu_custom_call.1} parent=1 // pred_fallthru
      _
    // Predicated region
    $region14: #{tpu_custom_call.1} parent=1 // pred_check
      _
    $region15: #{tpu_custom_call.1} parent=1 // pred_check_branch
      %20 = sbr.rel (0) target = $region17
    $region16: #{tpu_custom_call.1} parent=1 // pred_region
      _
    $region17: #{tpu_custom_call.1} parent=1 // pred_fallthru
      _
    // Predicated region
    $region18: #{tpu_custom_call.1} parent=1 // pred_check
      _
    $region19: #{tpu_custom_call.1} parent=1 // pred_check_branch
      %22 = sbr.rel (0) target = $region21
    $region20: #{tpu_custom_call.1} parent=1 // pred_region
      _
    $region21: #{tpu_custom_call.1} parent=1 // pred_fallthru
      _
    // Predicated region
    $region22: #{tpu_custom_call.1} parent=1 // pred_check
      _
    $region23: #{tpu_custom_call.1} parent=1 // pred_check_branch
      %24 = sbr.rel (0) target = $region25
    $region24: #{tpu_custom_call.1} parent=1 // pred_region
      _
    $region25: #{tpu_custom_call.1} parent=1 // pred_fallthru
      _
    // Predicated region
    $region26: #{tpu_custom_call.1} parent=1 // pred_check
      _
    $region27: #{tpu_custom_call.1} parent=1 // pred_check_branch
      %26 = sbr.rel (0) target = $region29
    $region28: #{tpu_custom_call.1} parent=1 // pred_region
      _
    $region29: #{tpu_custom_call.1} parent=1 // pred_fallthru
      _
    %v27 = vld [vmem:[%s0] sm:$0xff]
    %v28 = vld [vmem:[%s1] sm:$0xff]
    %v29 = vld [vmem:[%s1 + $0x8] sm:$0xff]
    %v30 = vld [vmem:[%s1 + $0x10] sm:$0xff]
    %v31 = vld [vmem:[%s1 + $0x18] sm:$0xff]
    %v32 = vld [vmem:[%s2] sm:$0x1]
    %v34 = vperm.slane %v32, 0
    %vm36 = vcmask 261120
    %v38 = vsel %vm36, %v27, 0
    %40 = vmatpush.msra.mxu0 0.0
    %41 = vmatpush.msra.mxu0 0.0
    %42 = vmatpush.msra.mxu0 0.0
    %43 = vmatpush.msra.mxu0 0.0
    %44 = vmatpush.msra.mxu0 0.0
    %45 = vmatpush.msra.mxu0 0.0
    %46 = vmatpush.msra.mxu0 0.0
    %47 = vmatpush.msra.mxu0 0.0
    %48 = vmatpush.msra.mxu0 0.0
    %49 = vmatpush.msra.mxu0 0.0
    %50 = vmatpush.msra.mxu0 0.0
    %51 = vmatpush.msra.mxu0 0.0
    %52 = vmatpush.msra.mxu0 %v31
    %53 = vmatpush.msra.mxu0 %v30
    %54 = vmatpush.msra.mxu0 %v29
    %55 = vmatpush.msra.mxu0 %v28
    %56 = vmatmul.f32.gmra.mxu0 %v38
    %v57 = vpop.f32.mrf.mxu0
    %v58 = vadd.f32 %v34, %v57
    %59 = vdwg.mxu0
    %v60 = vmul.f32 %v58, 0.01
    %v61 = vmax.f32 %v58, %v60
    %v62 = vld [vmem:[%s3] sm:$0xff]
    %v63 = vld [vmem:[%s3 + $0x8] sm:$0xff]
    %v64 = vld [vmem:[%s3 + $0x10] sm:$0xff]
    %v65 = vld [vmem:[%s3 + $0x18] sm:$0xff]
    %v66 = vld [vmem:[%s3 + $0x20] sm:$0xff]
    %v67 = vld [vmem:[%s3 + $0x28] sm:$0xff]
    %v68 = vld [vmem:[%s3 + $0x30] sm:$0xff]
    %v69 = vld [vmem:[%s3 + $0x38] sm:$0xff]
    %v70 = vld [vmem:[%s4] sm:$0x1]
    %v72 = vperm.slane %v70, 0
    %vm74 = vcmask 523264
    %v76 = vsel %vm74, %v61, 0
    %78 = vmatpush.msra.mxu0 0.0
    %79 = vmatpush.msra.mxu0 0.0
    %80 = vmatpush.msra.mxu0 0.0
    %81 = vmatpush.msra.mxu0 0.0
    %82 = vmatpush.msra.mxu0 0.0
    %83 = vmatpush.msra.mxu0 0.0
    %84 = vmatpush.msra.mxu0 0.0
    %85 = vmatpush.msra.mxu0 0.0
    %86 = vmatpush.msra.mxu0 %v69
    %87 = vmatpush.msra.mxu0 %v68
    %88 = vmatpush.msra.mxu0 %v67
    %89 = vmatpush.msra.mxu0 %v66
    %90 = vmatpush.msra.mxu0 %v65
    %91 = vmatpush.msra.mxu0 %v64
    %92 = vmatpush.msra.mxu0 %v63
    %93 = vmatpush.msra.mxu0 %v62
    %94 = vmatmul.f32.gmra.mxu0 %v76
    %v95 = vpop.f32.mrf.mxu0
    %v96 = vadd.f32 %v72, %v95
    %97 = vdwg.mxu0
    %v98 = vmul.f32 %v96, 0.01
    %v99 = vmax.f32 %v96, %v98
    %v100 = vld [vmem:[%s5] sm:$0xff]
    %v101 = vld [vmem:[%s5 + $0x8] sm:$0xff]
    %v102 = vld [vmem:[%s5 + $0x10] sm:$0xff]
    %v103 = vld [vmem:[%s5 + $0x18] sm:$0xff]
    %v104 = vld [vmem:[%s5 + $0x20] sm:$0xff]
    %v105 = vld [vmem:[%s5 + $0x28] sm:$0xff]
    %v106 = vld [vmem:[%s5 + $0x30] sm:$0xff]
    %v107 = vld [vmem:[%s5 + $0x38] sm:$0xff]
    %v108 = vld [vmem:[%s5 + $0x40] sm:$0xff]
    %v109 = vld [vmem:[%s5 + $0x48] sm:$0xff]
    %v110 = vld [vmem:[%s5 + $0x50] sm:$0xff]
    %v111 = vld [vmem:[%s5 + $0x58] sm:$0xff]
    %v112 = vld [vmem:[%s5 + $0x60] sm:$0xff]
    %v113 = vld [vmem:[%s5 + $0x68] sm:$0xff]
    %v114 = vld [vmem:[%s5 + $0x70] sm:$0xff]
    %v115 = vld [vmem:[%s5 + $0x78] sm:$0xff]
    %v116 = vld [vmem:[%s6] sm:$0x1]
    %v118 = vperm.slane %v116, 0
    %120 = vmatpush.msra.mxu0 %v115
    %121 = vmatpush.msra.mxu0 %v114
    %122 = vmatpush.msra.mxu0 %v113
    %123 = vmatpush.msra.mxu0 %v112
    %124 = vmatpush.msra.mxu0 %v111
    %125 = vmatpush.msra.mxu0 %v110
    %126 = vmatpush.msra.mxu0 %v109
    %127 = vmatpush.msra.mxu0 %v108
    %128 = vmatpush.msra.mxu0 %v107
    %129 = vmatpush.msra.mxu0 %v106
    %130 = vmatpush.msra.mxu0 %v105
    %131 = vmatpush.msra.mxu0 %v104
    %132 = vmatpush.msra.mxu0 %v103
    %133 = vmatpush.msra.mxu0 %v102
    %134 = vmatpush.msra.mxu0 %v101
    %135 = vmatpush.msra.mxu0 %v100
    %136 = vmatmul.f32.gmra.mxu0 %v99
    %v137 = vpop.f32.mrf.mxu0
    %v138 = vadd.f32 %v118, %v137
    %139 = vdwg.mxu0
    %v140 = vmul.f32 %v138, 0.01
    %v141 = vmax.f32 %v138, %v140
    %142 = vst.msk [vmem:[#allocation2] sm:$0xff] %vm74, %v141
    // Predicated region
    $region30: #{tpu_custom_call.1} parent=1 // pred_check
      _
    $region31: #{tpu_custom_call.1} parent=1 // pred_check_branch
      %144 = sbr.rel (0) target = $region33
    $region32: #{tpu_custom_call.1} parent=1 // pred_region
      %146 = vsyncadd [#allocation3], 0
      %s148 = sshll.u32 [#allocation2], 4
      %s149 = int_to_ptr.vmem [resolvable:$true] %s148
      %s150 = sshll.u32 %s7, 4
      %s151 = int_to_ptr.hbm [resolvable:$true] %s150
      %153 = dma.vmem_to_hbm [thread:$0]  %s149, 128, %s151, [#allocation3]
    $region33: #{tpu_custom_call.1} parent=1 // pred_fallthru
      _
    // Predicated region
    $region34: #{tpu_custom_call.1} parent=1 // pred_check
      _
    $region35: #{tpu_custom_call.1} parent=1 // pred_check_branch
      %155 = sbr.rel (0) target = $region37
    $region36: #{tpu_custom_call.1} parent=1 // pred_region
      %157 = dma.done [#allocation3], 128
    $region37: #{tpu_custom_call.1} parent=1 // pred_fallthru
      _
    %158 = vsyncpa [#allocation3], 1

</llo_original>
